<compile_context>
chip_gen: v7x
topology: tpu7x:2x2x1
jax: 0.10.0
libtpu: 0.0.40
codegen_flags: <defaults>
</compile_context>

<pallas_src>
import jax
import jax.numpy as jnp
from jax.experimental import pallas as pl
from jax.experimental.pallas import tpu as pltpu  # noqa: F401  (kept for future tiling params)


def affine_kernel(a_ref, x_ref, bias_ref, o_ref):
    # a_ref:    (dim, dim)    -- whole A matrix, resident in VMEM
    # x_ref:    (B, dim, dim) -- native batch layout, whole block
    # bias_ref: (1, dim)      -- bias row; broadcasts along sublanes for free
    # o_ref:    (B, dim, dim)
    a = a_ref[...]
    bias = bias_ref[...]  # (1, dim) -> broadcasts over rows of each (dim, dim) tile
    num_batch = x_ref.shape[0]
    # Statically unrolled tiny batch loop (B is a compile-time constant).
    for bb in range(num_batch):
        y = jnp.dot(a, x_ref[bb], preferred_element_type=jnp.float32)
        o_ref[bb] = (y + bias).astype(o_ref.dtype)


def make_affine_params(key, dim):
    """Mirror the module's __init__: A = Q from QR(randn), b = randn(dim).

    Also precomputes the (1, dim) bias row ONCE so the forward path does no
    per-call bias layout work (perf-review hoist).
    """
    k_a, k_b = jax.random.split(key)
    random_matrix = jax.random.normal(k_a, (dim, dim), dtype=jnp.float32)
    A, _ = jnp.linalg.qr(random_matrix)
    A = A.astype(jnp.float32)
    b = jax.random.normal(k_b, (dim,), dtype=jnp.float32)
    bias_row = b.reshape(1, dim)  # hoisted out of the forward hot path
    return A, b, bias_row


def affine_forward(A, x, bias_row):
    """A: (dim, dim), x: (B, dim, dim), bias_row: (1, dim) -> (B, dim, dim)."""
    B, dim, _ = x.shape

    flops = 2 * B * dim * dim * dim
    bytes_accessed = 4 * (dim * dim + B * dim * dim + dim + B * dim * dim)

    return pl.pallas_call(
        affine_kernel,
        out_shape=jax.ShapeDtypeStruct((B, dim, dim), x.dtype),
        # No grid: one resident step, whole-array blocks in VMEM.
        in_specs=[
            pl.BlockSpec((dim, dim), lambda: (0, 0)),        # A
            pl.BlockSpec((B, dim, dim), lambda: (0, 0, 0)),  # x (native layout)
            pl.BlockSpec((1, dim), lambda: (0, 0)),          # bias row
        ],
        out_specs=pl.BlockSpec((B, dim, dim), lambda: (0, 0, 0)),
        cost_estimate=pl.CostEstimate(
            flops=flops, transcendentals=0, bytes_accessed=bytes_accessed
        ),
    )(A, x, bias_row)


if __name__ == "__main__":
    dim = 32   # projector hidden dim
    B = 4      # batch of (dim, dim) matrices

    key = jax.random.PRNGKey(0)
    k_params, k_x = jax.random.split(key)

    A, b, bias_row = make_affine_params(k_params, dim)
    x = jax.random.normal(k_x, (B, dim, dim), dtype=jnp.float32)

    out = affine_forward(A, x, bias_row)
    out = jax.block_until_ready(out)

    # Pure-JAX reference for correctness check.
    ref = jnp.einsum("ij,bjk->bik", A, x) + b  # b broadcasts along last axis
    assert out.shape == (B, dim, dim)
    assert jnp.allclose(out, ref, atol=1e-5, rtol=1e-5), "mismatch vs reference"

    print("KERNEL_OK")
</pallas_src>

<mosaic_0001>
module attributes {stable_mosaic.version = 11 : i64} {
  func.func @affine_kernel(%arg0: memref<32x32xf32, #tpu.memory_space<vmem>>, %arg1: memref<4x32x32xf32, #tpu.memory_space<vmem>>, %arg2: memref<1x32xf32, #tpu.memory_space<vmem>>, %arg3: memref<4x32x32xf32, #tpu.memory_space<vmem>>) attributes {dimension_semantics = [], scalar_prefetch = 0 : i64, scratch_operands = 0 : i64, tpu.core_type = #tpu.core_type<tc>} {
    %c0 = arith.constant 0 : index
    %c0_0 = arith.constant 0 : index
    %0 = vector.load %arg0[%c0, %c0_0] : memref<32x32xf32, #tpu.memory_space<vmem>>, vector<32x32xf32>
    %c0_1 = arith.constant 0 : index
    %c0_2 = arith.constant 0 : index
    %1 = vector.load %arg2[%c0_1, %c0_2] : memref<1x32xf32, #tpu.memory_space<vmem>>, vector<1x32xf32>
    %c0_3 = arith.constant 0 : index
    %c0_4 = arith.constant 0 : index
    %c0_5 = arith.constant 0 : index
    %2 = vector.load %arg1[%c0_3, %c0_4, %c0_5] : memref<4x32x32xf32, #tpu.memory_space<vmem>>, vector<1x32x32xf32>
    %3 = vector.shape_cast %2 : vector<1x32x32xf32> to vector<32x32xf32>
    %cst = arith.constant dense<0.000000e+00> : vector<32x32xf32>
    %4 = tpu.matmul %0, %3, %cst {dimension_numbers = #tpu.dot_dimension_numbers<[1], [0], [0], [1], [0, 0, 1, 1], [], []>} : vector<32x32xf32>, vector<32x32xf32>, vector<32x32xf32> -> vector<32x32xf32>
    %5 = vector.broadcast %1 : vector<1x32xf32> to vector<32x32xf32>
    %6 = arith.addf %4, %5 : vector<32x32xf32>
    %c0_6 = arith.constant 0 : index
    %c0_7 = arith.constant 0 : index
    %c0_8 = arith.constant 0 : index
    %7 = vector.load %arg3[%c0_6, %c0_7, %c0_8] : memref<4x32x32xf32, #tpu.memory_space<vmem>>, vector<1x32x32xf32>
    %8 = vector.shape_cast %7 : vector<1x32x32xf32> to vector<32x32xf32>
    %9 = vector.shape_cast %6 : vector<32x32xf32> to vector<1x32x32xf32>
    tpu.vector_store %arg3[%c0_6, %c0_7, %c0_8], %9 {strides = array<i32>} : memref<4x32x32xf32, #tpu.memory_space<vmem>>, vector<1x32x32xf32>,
    %c1 = arith.constant 1 : index
    %c0_9 = arith.constant 0 : index
    %c0_10 = arith.constant 0 : index
    %10 = vector.load %arg1[%c1, %c0_9, %c0_10] : memref<4x32x32xf32, #tpu.memory_space<vmem>>, vector<1x32x32xf32>
    %11 = vector.shape_cast %10 : vector<1x32x32xf32> to vector<32x32xf32>
    %cst_11 = arith.constant dense<0.000000e+00> : vector<32x32xf32>
    %12 = tpu.matmul %0, %11, %cst_11 {dimension_numbers = #tpu.dot_dimension_numbers<[1], [0], [0], [1], [0, 0, 1, 1], [], []>} : vector<32x32xf32>, vector<32x32xf32>, vector<32x32xf32> -> vector<32x32xf32>
    %13 = vector.broadcast %1 : vector<1x32xf32> to vector<32x32xf32>
    %14 = arith.addf %12, %13 : vector<32x32xf32>
    %c1_12 = arith.constant 1 : index
    %c0_13 = arith.constant 0 : index
    %c0_14 = arith.constant 0 : index
    %15 = vector.load %arg3[%c1_12, %c0_13, %c0_14] : memref<4x32x32xf32, #tpu.memory_space<vmem>>, vector<1x32x32xf32>
    %16 = vector.shape_cast %15 : vector<1x32x32xf32> to vector<32x32xf32>
    %17 = vector.shape_cast %14 : vector<32x32xf32> to vector<1x32x32xf32>
    tpu.vector_store %arg3[%c1_12, %c0_13, %c0_14], %17 {strides = array<i32>} : memref<4x32x32xf32, #tpu.memory_space<vmem>>, vector<1x32x32xf32>,
    %c2 = arith.constant 2 : index
    %c0_15 = arith.constant 0 : index
    %c0_16 = arith.constant 0 : index
    %18 = vector.load %arg1[%c2, %c0_15, %c0_16] : memref<4x32x32xf32, #tpu.memory_space<vmem>>, vector<1x32x32xf32>
    %19 = vector.shape_cast %18 : vector<1x32x32xf32> to vector<32x32xf32>
    %cst_17 = arith.constant dense<0.000000e+00> : vector<32x32xf32>
    %20 = tpu.matmul %0, %19, %cst_17 {dimension_numbers = #tpu.dot_dimension_numbers<[1], [0], [0], [1], [0, 0, 1, 1], [], []>} : vector<32x32xf32>, vector<32x32xf32>, vector<32x32xf32> -> vector<32x32xf32>
    %21 = vector.broadcast %1 : vector<1x32xf32> to vector<32x32xf32>
    %22 = arith.addf %20, %21 : vector<32x32xf32>
    %c2_18 = arith.constant 2 : index
    %c0_19 = arith.constant 0 : index
    %c0_20 = arith.constant 0 : index
    %23 = vector.load %arg3[%c2_18, %c0_19, %c0_20] : memref<4x32x32xf32, #tpu.memory_space<vmem>>, vector<1x32x32xf32>
    %24 = vector.shape_cast %23 : vector<1x32x32xf32> to vector<32x32xf32>
    %25 = vector.shape_cast %22 : vector<32x32xf32> to vector<1x32x32xf32>
    tpu.vector_store %arg3[%c2_18, %c0_19, %c0_20], %25 {strides = array<i32>} : memref<4x32x32xf32, #tpu.memory_space<vmem>>, vector<1x32x32xf32>,
    %c3 = arith.constant 3 : index
    %c0_21 = arith.constant 0 : index
    %c0_22 = arith.constant 0 : index
    %26 = vector.load %arg1[%c3, %c0_21, %c0_22] : memref<4x32x32xf32, #tpu.memory_space<vmem>>, vector<1x32x32xf32>
    %27 = vector.shape_cast %26 : vector<1x32x32xf32> to vector<32x32xf32>
    %cst_23 = arith.constant dense<0.000000e+00> : vector<32x32xf32>
    %28 = tpu.matmul %0, %27, %cst_23 {dimension_numbers = #tpu.dot_dimension_numbers<[1], [0], [0], [1], [0, 0, 1, 1], [], []>} : vector<32x32xf32>, vector<32x32xf32>, vector<32x32xf32> -> vector<32x32xf32>
    %29 = vector.broadcast %1 : vector<1x32xf32> to vector<32x32xf32>
    %30 = arith.addf %28, %29 : vector<32x32xf32>
    %c3_24 = arith.constant 3 : index
    %c0_25 = arith.constant 0 : index
    %c0_26 = arith.constant 0 : index
    %31 = vector.load %arg3[%c3_24, %c0_25, %c0_26] : memref<4x32x32xf32, #tpu.memory_space<vmem>>, vector<1x32x32xf32>
    %32 = vector.shape_cast %31 : vector<1x32x32xf32> to vector<32x32xf32>
    %33 = vector.shape_cast %30 : vector<32x32xf32> to vector<1x32x32xf32>
    tpu.vector_store %arg3[%c3_24, %c0_25, %c0_26], %33 {strides = array<i32>} : memref<4x32x32xf32, #tpu.memory_space<vmem>>, vector<1x32x32xf32>,
    return
  }
}

</mosaic_0001>

<llo_original>
// kernel: tpu_custom_call.1
$region0: #{tpu_custom_call.1}
  #allocation0 [shape = 'u32[]', space=smem, size = 0x4, offset = 0x4, fixed_abs, tag = 'smem constant byte address 0x4 - core index']
  #allocation1 [shape = 'u32[144,128]{1,0:T(1,128)}', space=vmem, size = 0x12000, scoped, tag = 'internal scratch']
  %s0 = inlined_call_operand.hbm [shape: f32[32,32], index: 0, kind: input, shape index: {}]
  %s1 = inlined_call_operand.hbm [shape: f32[4,32,32], index: 1, kind: input, shape index: {}]
  %s2 = inlined_call_operand.vmem [shape: f32[1,32], index: 2, kind: input, shape index: {}]
  %s3 = inlined_call_operand.hbm [shape: f32[4,32,32], index: 3, kind: output, shape index: {}]
  %s4 = sld [smem:[#allocation0]]
  $region30: #{tpu_custom_call.1} parent=0
    _
  %s6 = ssub.s32 1, %s4
  %s7 = scalar_select 0, %s6, %s4
  $region1: #{tpu_custom_call.1} parent=0
    #allocation2 [shape = 'u8[16384]{0}', space=vmem, size = 0x4000, scoped, tag = 'input window, operand 0, single buffered']
    #allocation3 [shape = 's32[1]{0}', space=sflag, size = 0x4, scoped, tag = 'scoped memory for tpu_custom_call.1']
    #allocation4 [shape = 's32[1]{0}', space=sflag, size = 0x4, scoped, tag = 'scoped memory for tpu_custom_call.1']
    #allocation5 [shape = 'u8[65536]{0}', space=vmem, size = 0x10000, scoped, tag = 'input window, operand 1, single buffered']
    #allocation6 [shape = 's32[1]{0}', space=sflag, size = 0x4, scoped, tag = 'scoped memory for tpu_custom_call.1']
    #allocation7 [shape = 'u8[65536]{0}', space=vmem, size = 0x10000, scoped, tag = 'output window, operand 0, single buffered']
    %8 = vsyncpa [#allocation3], 0
    %9 = vsyncpa [#allocation6], 0
    %10 = vsyncpa [#allocation4], 0
    // Predicated region
    $region2: #{tpu_custom_call.1} parent=1 // pred_check
      _
    $region3: #{tpu_custom_call.1} parent=1 // pred_check_branch
      %12 = sbr.rel (0) target = $region5
    $region4: #{tpu_custom_call.1} parent=1 // pred_region
      %s14 = ssub.s32 512, 512
      %15 = vsyncadd [#allocation3], %s14
      %s16 = sshll.u32 [#allocation2], 4
      %s17 = int_to_ptr.vmem [resolvable:$true] %s16
      %22 = dma.hbm_to_vmem [thread:$0]  %s0, 512, %s17, [#allocation3], 128, 128, 8
    $region5: #{tpu_custom_call.1} parent=1 // pred_fallthru
      _
    // Predicated region
    $region6: #{tpu_custom_call.1} parent=1 // pred_check
      _
    $region7: #{tpu_custom_call.1} parent=1 // pred_check_branch
      %24 = sbr.rel (0) target = $region9
    $region8: #{tpu_custom_call.1} parent=1 // pred_region
      %s26 = ssub.s32 2048, 2048
      %27 = vsyncadd [#allocation6], %s26
      %s28 = sshll.u32 [#allocation5], 4
      %s29 = int_to_ptr.vmem [resolvable:$true] %s28
      %34 = dma.hbm_to_vmem [thread:$0]  %s1, 2048, %s29, [#allocation6], 128, 128, 8
    $region9: #{tpu_custom_call.1} parent=1 // pred_fallthru
      _
    // Predicated region
    $region10: #{tpu_custom_call.1} parent=1 // pred_check
      _
    $region11: #{tpu_custom_call.1} parent=1 // pred_check_branch
      %36 = sbr.rel (0) target = $region13
    $region12: #{tpu_custom_call.1} parent=1 // pred_region
      _
    $region13: #{tpu_custom_call.1} parent=1 // pred_fallthru
      _
    // Predicated region
    $region14: #{tpu_custom_call.1} parent=1 // pred_check
      _
    $region15: #{tpu_custom_call.1} parent=1 // pred_check_branch
      %38 = sbr.rel (0) target = $region17
    $region16: #{tpu_custom_call.1} parent=1 // pred_region
      %39 = dma.done [#allocation3], 512
    $region17: #{tpu_custom_call.1} parent=1 // pred_fallthru
      _
    // Predicated region
    $region18: #{tpu_custom_call.1} parent=1 // pred_check
      _
    $region19: #{tpu_custom_call.1} parent=1 // pred_check_branch
      %41 = sbr.rel (0) target = $region21
    $region20: #{tpu_custom_call.1} parent=1 // pred_region
      %42 = dma.done [#allocation6], 2048
    $region21: #{tpu_custom_call.1} parent=1 // pred_fallthru
      _
    %v43 = vld [vmem:[#allocation2] sm:$0xff]
    %v44 = vld [vmem:[#allocation2 + $0x8] sm:$0xff]
    %v45 = vld [vmem:[#allocation2 + $0x10] sm:$0xff]
    %v46 = vld [vmem:[#allocation2 + $0x18] sm:$0xff]
    %v47 = vld [vmem:[%s2] sm:$0x1]
    %v48 = vld [vmem:[#allocation5] sm:$0xff]
    %v49 = vld [vmem:[#allocation5 + $0x8] sm:$0xff]
    %v50 = vld [vmem:[#allocation5 + $0x10] sm:$0xff]
    %v51 = vld [vmem:[#allocation5 + $0x18] sm:$0xff]
    %v53 = vlaneseq
    %v54 = vshrl.u32 %v53, 7
    %v55 = vsub.s32 0, %v54
    %v56 = vrot.slane %v47, %v55
    %vm58 = vcmask 261120
    %v60 = vsel %vm58, %v43, 0
    %v63 = vsel %vm58, %v44, 0
    %v66 = vsel %vm58, %v45, 0
    %v69 = vsel %vm58, %v46, 0
    %71 = vmatprep.subr.mxu0 0.0
    %72 = vmatpush1.msra.mxu0 %v48
    %73 = vmatprep.subr.mxu0 0.0
    %74 = vmatpush1.msra.mxu0 %v49
    %75 = vmatprep.subr.mxu0 0.0
    %76 = vmatpush1.msra.mxu0 %v50
    %77 = vmatprep.subr.mxu0 0.0
    %78 = vmatpush1.msra.mxu0 %v51
    %79 = vmatprep.subr.mxu0 0.0
    %80 = vmatpush1.msra.mxu0 0.0
    %81 = vmatprep.subr.mxu0 0.0
    %82 = vmatpush1.msra.mxu0 0.0
    %83 = vmatprep.subr.mxu0 0.0
    %84 = vmatpush1.msra.mxu0 0.0
    %85 = vmatprep.subr.mxu0 0.0
    %86 = vmatpush1.msra.mxu0 0.0
    %87 = vmatprep.subr.mxu0 0.0
    %88 = vmatpush1.msra.mxu0 0.0
    %89 = vmatprep.subr.mxu0 0.0
    %90 = vmatpush1.msra.mxu0 0.0
    %91 = vmatprep.subr.mxu0 0.0
    %92 = vmatpush1.msra.mxu0 0.0
    %93 = vmatprep.subr.mxu0 0.0
    %94 = vmatpush1.msra.mxu0 0.0
    %95 = vmatprep.subr.mxu0 0.0
    %96 = vmatpush1.msra.mxu0 0.0
    %97 = vmatprep.subr.mxu0 0.0
    %98 = vmatpush1.msra.mxu0 0.0
    %99 = vmatprep.subr.mxu0 0.0
    %100 = vmatpush1.msra.mxu0 0.0
    %101 = vmatprep.subr.mxu0 0.0
    %102 = vmatpush1.msra.mxu0 0.0
    %103 = vmatprep.subr.mxu0 0.0
    %104 = vmatpush1.msra.mxu0 0.0
    %105 = vmatprep.subr.mxu0 0.0
    %106 = vmatpush1.msra.mxu0 0.0
    %107 = vmatprep.subr.mxu0 0.0
    %108 = vmatpush1.msra.mxu0 0.0
    %109 = vmatprep.subr.mxu0 0.0
    %110 = vmatpush1.msra.mxu0 0.0
    %111 = vmatprep.subr.mxu0 0.0
    %112 = vmatpush1.msra.mxu0 0.0
    %113 = vmatprep.subr.mxu0 0.0
    %114 = vmatpush1.msra.mxu0 0.0
    %115 = vmatprep.subr.mxu0 0.0
    %116 = vmatpush1.msra.mxu0 0.0
    %117 = vmatprep.subr.mxu0 0.0
    %118 = vmatpush1.msra.mxu0 0.0
    %119 = vmatprep.subr.mxu0 0.0
    %120 = vmatpush1.msra.mxu0 0.0
    %121 = vmatprep.subr.mxu0 0.0
    %122 = vmatpush1.msra.mxu0 0.0
    %123 = vmatprep.subr.mxu0 0.0
    %124 = vmatpush1.msra.mxu0 0.0
    %125 = vmatprep.subr.mxu0 0.0
    %126 = vmatpush1.msra.mxu0 0.0
    %127 = vmatprep.subr.mxu0 0.0
    %128 = vmatpush1.msra.mxu0 0.0
    %129 = vmatprep.subr.mxu0 0.0
    %130 = vmatpush1.msra.mxu0 0.0
    %131 = vmatprep.subr.mxu0 0.0
    %132 = vmatpush1.msra.mxu0 0.0
    %133 = vmatprep.subr.mxu0 0.0
    %134 = vmatpush1.msra.mxu0 0.0
    %135 = vmatprep.mubr.f32.mxu0 0.0
    %136 = vmatmul.mubr.f32.gmra.mrb[0].mxu0 %v60
    %v137 = vpop.f32.mrb[0].mxu0
    %v138 = vadd.f32 %v56, %v137
    %v139 = vpop.f32.mrb[0].mxu0
    %140 = vmatprep.mubr.f32.mxu0 0.0
    %141 = vmatmul.mubr.f32.gmra.mrb[0].mxu0 %v63
    %v142 = vpop.f32.mrb[0].mxu0
    %v143 = vadd.f32 %v56, %v142
    %v144 = vpop.f32.mrb[0].mxu0
    %145 = vmatprep.mubr.f32.mxu0 0.0
    %146 = vmatmul.mubr.f32.gmra.mrb[0].mxu0 %v66
    %v147 = vpop.f32.mrb[0].mxu0
    %v148 = vadd.f32 %v56, %v147
    %v149 = vpop.f32.mrb[0].mxu0
    %150 = vmatprep.mubr.f32.mxu0 0.0
    %151 = vmatmul.mubr.f32.gmra.mrb[0].mxu0 %v69
    %v152 = vpop.f32.mrb[0].mxu0
    %v153 = vadd.f32 %v56, %v152
    %v154 = vpop.f32.mrb[0].mxu0
    %155 = vdwg.mxu0
    %156 = vst.msk [vmem:[#allocation7] sm:$0xff] %vm58, %v138
    %157 = vst.msk [vmem:[#allocation7 + $0x8] sm:$0xff] %vm58, %v143
    %158 = vst.msk [vmem:[#allocation7 + $0x10] sm:$0xff] %vm58, %v148
    %159 = vst.msk [vmem:[#allocation7 + $0x18] sm:$0xff] %vm58, %v153
    %s160 = scalar_lea.vmem [#allocation5], 32
    %v161 = vld [vmem:[%s160] sm:$0xff]
    %v162 = vld [vmem:[%s160 + $0x8] sm:$0xff]
    %v163 = vld [vmem:[%s160 + $0x10] sm:$0xff]
    %v164 = vld [vmem:[%s160 + $0x18] sm:$0xff]
    %165 = vmatprep.subr.mxu0 0.0
    %166 = vmatpush1.msra.mxu0 %v161
    %167 = vmatprep.subr.mxu0 0.0
    %168 = vmatpush1.msra.mxu0 %v162
    %169 = vmatprep.subr.mxu0 0.0
    %170 = vmatpush1.msra.mxu0 %v163
    %171 = vmatprep.subr.mxu0 0.0
    %172 = vmatpush1.msra.mxu0 %v164
    %173 = vmatprep.subr.mxu0 0.0
    %174 = vmatpush1.msra.mxu0 0.0
    %175 = vmatprep.subr.mxu0 0.0
    %176 = vmatpush1.msra.mxu0 0.0
    %177 = vmatprep.subr.mxu0 0.0
    %178 = vmatpush1.msra.mxu0 0.0
    %179 = vmatprep.subr.mxu0 0.0
    %180 = vmatpush1.msra.mxu0 0.0
    %181 = vmatprep.subr.mxu0 0.0
    %182 = vmatpush1.msra.mxu0 0.0
    %183 = vmatprep.subr.mxu0 0.0
    %184 = vmatpush1.msra.mxu0 0.0
    %185 = vmatprep.subr.mxu0 0.0
    %186 = vmatpush1.msra.mxu0 0.0
    %187 = vmatprep.subr.mxu0 0.0
    %188 = vmatpush1.msra.mxu0 0.0
    %189 = vmatprep.subr.mxu0 0.0
    %190 = vmatpush1.msra.mxu0 0.0
    %191 = vmatprep.subr.mxu0 0.0
    %192 = vmatpush1.msra.mxu0 0.0
    %193 = vmatprep.subr.mxu0 0.0
    %194 = vmatpush1.msra.mxu0 0.0
    %195 = vmatprep.subr.mxu0 0.0
    %196 = vmatpush1.msra.mxu0 0.0
    %197 = vmatprep.subr.mxu0 0.0
    %198 = vmatpush1.msra.mxu0 0.0
    %199 = vmatprep.subr.mxu0 0.0
    %200 = vmatpush1.msra.mxu0 0.0
    %201 = vmatprep.subr.mxu0 0.0
    %202 = vmatpush1.msra.mxu0 0.0
    %203 = vmatprep.subr.mxu0 0.0
    %204 = vmatpush1.msra.mxu0 0.0
    %205 = vmatprep.subr.mxu0 0.0
    %206 = vmatpush1.msra.mxu0 0.0
    %207 = vmatprep.subr.mxu0 0.0
    %208 = vmatpush1.msra.mxu0 0.0
    %209 = vmatprep.subr.mxu0 0.0
    %210 = vmatpush1.msra.mxu0 0.0
    %211 = vmatprep.subr.mxu0 0.0
    %212 = vmatpush1.msra.mxu0 0.0
    %213 = vmatprep.subr.mxu0 0.0
    %214 = vmatpush1.msra.mxu0 0.0
    %215 = vmatprep.subr.mxu0 0.0
    %216 = vmatpush1.msra.mxu0 0.0
    %217 = vmatprep.subr.mxu0 0.0
    %218 = vmatpush1.msra.mxu0 0.0
    %219 = vmatprep.subr.mxu0 0.0
    %220 = vmatpush1.msra.mxu0 0.0
    %221 = vmatprep.subr.mxu0 0.0
    %222 = vmatpush1.msra.mxu0 0.0
    %223 = vmatprep.subr.mxu0 0.0
    %224 = vmatpush1.msra.mxu0 0.0
    %225 = vmatprep.subr.mxu0 0.0
    %226 = vmatpush1.msra.mxu0 0.0
    %227 = vmatprep.subr.mxu0 0.0
    %228 = vmatpush1.msra.mxu0 0.0
    %229 = vmatprep.mubr.f32.mxu0 0.0
    %230 = vmatmul.mubr.f32.gmra.mrb[0].mxu0 %v60
    %v231 = vpop.f32.mrb[0].mxu0
    %v232 = vadd.f32 %v56, %v231
    %v233 = vpop.f32.mrb[0].mxu0
    %234 = vmatprep.mubr.f32.mxu0 0.0
    %235 = vmatmul.mubr.f32.gmra.mrb[0].mxu0 %v63
    %v236 = vpop.f32.mrb[0].mxu0
    %v237 = vadd.f32 %v56, %v236
    %v238 = vpop.f32.mrb[0].mxu0
    %239 = vmatprep.mubr.f32.mxu0 0.0
    %240 = vmatmul.mubr.f32.gmra.mrb[0].mxu0 %v66
    %v241 = vpop.f32.mrb[0].mxu0
    %v242 = vadd.f32 %v56, %v241
    %v243 = vpop.f32.mrb[0].mxu0
    %244 = vmatprep.mubr.f32.mxu0 0.0
    %245 = vmatmul.mubr.f32.gmra.mrb[0].mxu0 %v69
    %v246 = vpop.f32.mrb[0].mxu0
    %v247 = vadd.f32 %v56, %v246
    %v248 = vpop.f32.mrb[0].mxu0
    %249 = vdwg.mxu0
    %s250 = scalar_lea.vmem [#allocation7], 32
    %251 = vst.msk [vmem:[%s250] sm:$0xff] %vm58, %v232
    %252 = vst.msk [vmem:[%s250 + $0x8] sm:$0xff] %vm58, %v237
    %253 = vst.msk [vmem:[%s250 + $0x10] sm:$0xff] %vm58, %v242
    %254 = vst.msk [vmem:[%s250 + $0x18] sm:$0xff] %vm58, %v247
    %s255 = scalar_lea.vmem [#allocation5], 64
    %v256 = vld [vmem:[%s255] sm:$0xff]
    %v257 = vld [vmem:[%s255 + $0x8] sm:$0xff]
    %v258 = vld [vmem:[%s255 + $0x10] sm:$0xff]
    %v259 = vld [vmem:[%s255 + $0x18] sm:$0xff]
    %260 = vmatprep.subr.mxu0 0.0
    %261 = vmatpush1.msra.mxu0 %v256
    %262 = vmatprep.subr.mxu0 0.0
    %263 = vmatpush1.msra.mxu0 %v257
    %264 = vmatprep.subr.mxu0 0.0
    %265 = vmatpush1.msra.mxu0 %v258
    %266 = vmatprep.subr.mxu0 0.0
    %267 = vmatpush1.msra.mxu0 %v259
    %268 = vmatprep.subr.mxu0 0.0
    %269 = vmatpush1.msra.mxu0 0.0
    %270 = vmatprep.subr.mxu0 0.0
    %271 = vmatpush1.msra.mxu0 0.0
    %272 = vmatprep.subr.mxu0 0.0
    %273 = vmatpush1.msra.mxu0 0.0
    %274 = vmatprep.subr.mxu0 0.0
    %275 = vmatpush1.msra.mxu0 0.0
    %276 = vmatprep.subr.mxu0 0.0
    %277 = vmatpush1.msra.mxu0 0.0
    %278 = vmatprep.subr.mxu0 0.0
    %279 = vmatpush1.msra.mxu0 0.0
    %280 = vmatprep.subr.mxu0 0.0
    %281 = vmatpush1.msra.mxu0 0.0
    %282 = vmatprep.subr.mxu0 0.0
    %283 = vmatpush1.msra.mxu0 0.0
    %284 = vmatprep.subr.mxu0 0.0
    %285 = vmatpush1.msra.mxu0 0.0
    %286 = vmatprep.subr.mxu0 0.0
    %287 = vmatpush1.msra.mxu0 0.0
    %288 = vmatprep.subr.mxu0 0.0
    %289 = vmatpush1.msra.mxu0 0.0
    %290 = vmatprep.subr.mxu0 0.0
    %291 = vmatpush1.msra.mxu0 0.0
    %292 = vmatprep.subr.mxu0 0.0
    %293 = vmatpush1.msra.mxu0 0.0
    %294 = vmatprep.subr.mxu0 0.0
    %295 = vmatpush1.msra.mxu0 0.0
    %296 = vmatprep.subr.mxu0 0.0
    %297 = vmatpush1.msra.mxu0 0.0
    %298 = vmatprep.subr.mxu0 0.0
    %299 = vmatpush1.msra.mxu0 0.0
    %300 = vmatprep.subr.mxu0 0.0
    %301 = vmatpush1.msra.mxu0 0.0
    %302 = vmatprep.subr.mxu0 0.0
    %303 = vmatpush1.msra.mxu0 0.0
    %304 = vmatprep.subr.mxu0 0.0
    %305 = vmatpush1.msra.mxu0 0.0
    %306 = vmatprep.subr.mxu0 0.0
    %307 = vmatpush1.msra.mxu0 0.0
    %308 = vmatprep.subr.mxu0 0.0
    %309 = vmatpush1.msra.mxu0 0.0
    %310 = vmatprep.subr.mxu0 0.0
    %311 = vmatpush1.msra.mxu0 0.0
    %312 = vmatprep.subr.mxu0 0.0
    %313 = vmatpush1.msra.mxu0 0.0
    %314 = vmatprep.subr.mxu0 0.0
    %315 = vmatpush1.msra.mxu0 0.0
    %316 = vmatprep.subr.mxu0 0.0
    %317 = vmatpush1.msra.mxu0 0.0
    %318 = vmatprep.subr.mxu0 0.0
    %319 = vmatpush1.msra.mxu0 0.0
    %320 = vmatprep.subr.mxu0 0.0
    %321 = vmatpush1.msra.mxu0 0.0
    %322 = vmatprep.subr.mxu0 0.0
    %323 = vmatpush1.msra.mxu0 0.0
    %324 = vmatprep.mubr.f32.mxu0 0.0
    %325 = vmatmul.mubr.f32.gmra.mrb[0].mxu0 %v60
    %v326 = vpop.f32.mrb[0].mxu0
    %v327 = vadd.f32 %v56, %v326
    %v328 = vpop.f32.mrb[0].mxu0
    %329 = vmatprep.mubr.f32.mxu0 0.0
    %330 = vmatmul.mubr.f32.gmra.mrb[0].mxu0 %v63
    %v331 = vpop.f32.mrb[0].mxu0
    %v332 = vadd.f32 %v56, %v331
    %v333 = vpop.f32.mrb[0].mxu0
    %334 = vmatprep.mubr.f32.mxu0 0.0
    %335 = vmatmul.mubr.f32.gmra.mrb[0].mxu0 %v66
    %v336 = vpop.f32.mrb[0].mxu0
    %v337 = vadd.f32 %v56, %v336
    %v338 = vpop.f32.mrb[0].mxu0
    %339 = vmatprep.mubr.f32.mxu0 0.0
    %340 = vmatmul.mubr.f32.gmra.mrb[0].mxu0 %v69
    %v341 = vpop.f32.mrb[0].mxu0
    %v342 = vadd.f32 %v56, %v341
    %v343 = vpop.f32.mrb[0].mxu0
    %344 = vdwg.mxu0
    %s345 = scalar_lea.vmem [#allocation7], 64
    %346 = vst.msk [vmem:[%s345] sm:$0xff] %vm58, %v327
    %347 = vst.msk [vmem:[%s345 + $0x8] sm:$0xff] %vm58, %v332
    %348 = vst.msk [vmem:[%s345 + $0x10] sm:$0xff] %vm58, %v337
    %349 = vst.msk [vmem:[%s345 + $0x18] sm:$0xff] %vm58, %v342
    %s350 = scalar_lea.vmem [#allocation5], 96
    %v351 = vld [vmem:[%s350] sm:$0xff]
    %v352 = vld [vmem:[%s350 + $0x8] sm:$0xff]
    %v353 = vld [vmem:[%s350 + $0x10] sm:$0xff]
    %v354 = vld [vmem:[%s350 + $0x18] sm:$0xff]
    %355 = vmatprep.subr.mxu0 0.0
    %356 = vmatpush1.msra.mxu0 %v351
    %357 = vmatprep.subr.mxu0 0.0
    %358 = vmatpush1.msra.mxu0 %v352
    %359 = vmatprep.subr.mxu0 0.0
    %360 = vmatpush1.msra.mxu0 %v353
    %361 = vmatprep.subr.mxu0 0.0
    %362 = vmatpush1.msra.mxu0 %v354
    %363 = vmatprep.subr.mxu0 0.0
    %364 = vmatpush1.msra.mxu0 0.0
    %365 = vmatprep.subr.mxu0 0.0
    %366 = vmatpush1.msra.mxu0 0.0
    %367 = vmatprep.subr.mxu0 0.0
    %368 = vmatpush1.msra.mxu0 0.0
    %369 = vmatprep.subr.mxu0 0.0
    %370 = vmatpush1.msra.mxu0 0.0
    %371 = vmatprep.subr.mxu0 0.0
    %372 = vmatpush1.msra.mxu0 0.0
    %373 = vmatprep.subr.mxu0 0.0
    %374 = vmatpush1.msra.mxu0 0.0
    %375 = vmatprep.subr.mxu0 0.0
    %376 = vmatpush1.msra.mxu0 0.0
    %377 = vmatprep.subr.mxu0 0.0
    %378 = vmatpush1.msra.mxu0 0.0
    %379 = vmatprep.subr.mxu0 0.0
    %380 = vmatpush1.msra.mxu0 0.0
    %381 = vmatprep.subr.mxu0 0.0
    %382 = vmatpush1.msra.mxu0 0.0
    %383 = vmatprep.subr.mxu0 0.0
    %384 = vmatpush1.msra.mxu0 0.0
    %385 = vmatprep.subr.mxu0 0.0
    %386 = vmatpush1.msra.mxu0 0.0
    %387 = vmatprep.subr.mxu0 0.0
    %388 = vmatpush1.msra.mxu0 0.0
    %389 = vmatprep.subr.mxu0 0.0
    %390 = vmatpush1.msra.mxu0 0.0
    %391 = vmatprep.subr.mxu0 0.0
    %392 = vmatpush1.msra.mxu0 0.0
    %393 = vmatprep.subr.mxu0 0.0
    %394 = vmatpush1.msra.mxu0 0.0
    %395 = vmatprep.subr.mxu0 0.0
    %396 = vmatpush1.msra.mxu0 0.0
    %397 = vmatprep.subr.mxu0 0.0
    %398 = vmatpush1.msra.mxu0 0.0
    %399 = vmatprep.subr.mxu0 0.0
    %400 = vmatpush1.msra.mxu0 0.0
    %401 = vmatprep.subr.mxu0 0.0
    %402 = vmatpush1.msra.mxu0 0.0
    %403 = vmatprep.subr.mxu0 0.0
    %404 = vmatpush1.msra.mxu0 0.0
    %405 = vmatprep.subr.mxu0 0.0
    %406 = vmatpush1.msra.mxu0 0.0
    %407 = vmatprep.subr.mxu0 0.0
    %408 = vmatpush1.msra.mxu0 0.0
    %409 = vmatprep.subr.mxu0 0.0
    %410 = vmatpush1.msra.mxu0 0.0
    %411 = vmatprep.subr.mxu0 0.0
    %412 = vmatpush1.msra.mxu0 0.0
    %413 = vmatprep.subr.mxu0 0.0
    %414 = vmatpush1.msra.mxu0 0.0
    %415 = vmatprep.subr.mxu0 0.0
    %416 = vmatpush1.msra.mxu0 0.0
    %417 = vmatprep.subr.mxu0 0.0
    %418 = vmatpush1.msra.mxu0 0.0
    %419 = vmatprep.mubr.f32.mxu0 0.0
    %420 = vmatmul.mubr.f32.gmra.mrb[0].mxu0 %v60
    %v421 = vpop.f32.mrb[0].mxu0
    %v422 = vadd.f32 %v56, %v421
    %v423 = vpop.f32.mrb[0].mxu0
    %424 = vmatprep.mubr.f32.mxu0 0.0
    %425 = vmatmul.mubr.f32.gmra.mrb[0].mxu0 %v63
    %v426 = vpop.f32.mrb[0].mxu0
    %v427 = vadd.f32 %v56, %v426
    %v428 = vpop.f32.mrb[0].mxu0
    %429 = vmatprep.mubr.f32.mxu0 0.0
    %430 = vmatmul.mubr.f32.gmra.mrb[0].mxu0 %v66
    %v431 = vpop.f32.mrb[0].mxu0
    %v432 = vadd.f32 %v56, %v431
    %v433 = vpop.f32.mrb[0].mxu0
    %434 = vmatprep.mubr.f32.mxu0 0.0
    %435 = vmatmul.mubr.f32.gmra.mrb[0].mxu0 %v69
    %v436 = vpop.f32.mrb[0].mxu0
    %v437 = vadd.f32 %v56, %v436
    %v438 = vpop.f32.mrb[0].mxu0
    %439 = vdwg.mxu0
    %s440 = scalar_lea.vmem [#allocation7], 96
    %441 = vst.msk [vmem:[%s440] sm:$0xff] %vm58, %v422
    %442 = vst.msk [vmem:[%s440 + $0x8] sm:$0xff] %vm58, %v427
    %443 = vst.msk [vmem:[%s440 + $0x10] sm:$0xff] %vm58, %v432
    %444 = vst.msk [vmem:[%s440 + $0x18] sm:$0xff] %vm58, %v437
    // Predicated region
    $region22: #{tpu_custom_call.1} parent=1 // pred_check
      _
    $region23: #{tpu_custom_call.1} parent=1 // pred_check_branch
      %446 = sbr.rel (0) target = $region25
    $region24: #{tpu_custom_call.1} parent=1 // pred_region
      %s448 = ssub.s32 2048, 2048
      %449 = vsyncadd [#allocation4], %s448
      %s450 = sshll.u32 [#allocation7], 4
      %s451 = int_to_ptr.vmem [resolvable:$true] %s450
      %456 = dma.vmem_to_hbm [thread:$0]  %s451, 2048, %s3, [#allocation4], 128, 128, 8
    $region25: #{tpu_custom_call.1} parent=1 // pred_fallthru
      _
    // Predicated region
    $region26: #{tpu_custom_call.1} parent=1 // pred_check
      _
    $region27: #{tpu_custom_call.1} parent=1 // pred_check_branch
      %458 = sbr.rel (0) target = $region29
    $region28: #{tpu_custom_call.1} parent=1 // pred_region
      %459 = dma.done [#allocation4], 2048
    $region29: #{tpu_custom_call.1} parent=1 // pred_fallthru
      _
    %460 = vsyncpa [#allocation3], 1
    %461 = vsyncpa [#allocation6], 1
    %462 = vsyncpa [#allocation4], 1

</llo_original>
